<compile_context>
chip_gen: v5e
topology: v5e:2x2
jax: 0.10.0
libtpu: 0.0.40
codegen_flags: <defaults>
</compile_context>

<pallas_src>
import functools
import math

import jax
import jax.numpy as jnp
from jax.experimental import pallas as pl
from jax.experimental.pallas import tpu as pltpu


_VMEM_LIMIT = 28 * 1024 * 1024  # safe headroom on v7x (64 MiB) and fine on v5e/v6e (128 MiB)


def _largest_divisor(n, cap, align=1):
    """Largest divisor of n that is <= cap and a multiple of `align`; falls back to n."""
    if n <= cap and n % align == 0:
        return n
    for d in range(min(cap, n), 0, -1):
        if n % d == 0 and d % align == 0:
            return d
    return n


def _pick_s_tile(S, d_llm):
    """S tile for the K/V projection stage: full S when the tile is modest, otherwise
    a 128-multiple divisor keeping one (d_llm, TS) bf16 tile around ~4 MiB."""
    row_bytes = 2 * d_llm
    if S * row_bytes <= (4 << 20) or S % 128 != 0:
        return S
    cap = max(128, ((4 << 20) // row_bytes) // 128 * 128)
    return _largest_divisor(S, cap, align=128)


def _pick_batch_block(B, L, S):
    """Batch block so TB*L rows feed the MXU (~256) while the (TB*L, S) f32 scores
    tile stays small, preferring >= 2 grid steps (v7x has 2 TensorCores)."""
    if L % 8 != 0:  # merging (TB, L) into rows must stay a pure relabel
        return 1
    divisors = [d for d in range(1, B + 1) if B % d == 0]
    best = 1
    for d in divisors:
        rows = d * L
        if rows <= 256 and rows * S * 4 <= (1 << 20):
            best = d
    if B // best < 2:
        smaller = [d for d in divisors if d < best]
        if smaller:
            best = smaller[-1]
    return best


# ---------------------------------------------------------------------------
# Shared per-block attention math (Q/O projections fused across heads).
# ---------------------------------------------------------------------------
def _attention_math(x, wq, bq, get_kT, get_v, wo, bo, H, E):
    """x:(N,d_model) bf16; wq:(d_model,H*E) bf16 (1/sqrt(E) folded); bq:(1,H*E) f32;
    get_kT(h)->(E,S) bf16; get_v(h)->(S,E) bf16; wo:(H*E,d_out) bf16; bo:(1,d_out) f32.
    Returns (N, d_out) f32."""
    cdt = wq.dtype
    q_all = jnp.dot(x, wq, preferred_element_type=jnp.float32) + bq          # (N, H*E)
    ctx = []
    for h in range(H):
        q_h = q_all[:, h * E:(h + 1) * E].astype(cdt)                        # (N, E)
        s = jnp.dot(q_h, get_kT(h), preferred_element_type=jnp.float32)      # (N, S)
        s = s - jnp.max(s, axis=-1, keepdims=True)
        p = jnp.exp(s)
        a = p * pl.reciprocal(jnp.sum(p, axis=-1, keepdims=True), approx=True)
        # TODO(synk): attention dropout (p=0.1) omitted — kernel implements eval mode.
        ctx.append(jnp.dot(a.astype(cdt), get_v(h), preferred_element_type=jnp.float32))
    ctx = jnp.concatenate(ctx, axis=-1).astype(cdt)                          # (N, H*E)
    return jnp.dot(ctx, wo, preferred_element_type=jnp.float32) + bo         # (N, d_out)


# ---------------------------------------------------------------------------
# Stage 1: batch-invariant K/V projections (source/value read from HBM once).
# ---------------------------------------------------------------------------
def _kv_projection_kernel(H, srcT_ref, val_ref, wk_ref, bk_ref, wv_ref, bv_ref,
                          kT_out_ref, v_out_ref):
    # K^T for all heads in one wide MXU matmul: (H*E, d_llm) @ (d_llm, TS).
    kT = jnp.dot(wk_ref[...], srcT_ref[...], preferred_element_type=jnp.float32) + bk_ref[...]
    kT_out_ref[...] = kT.astype(kT_out_ref.dtype)
    # V head-major so the attention stage only indexes the leading axis.
    for h in range(H):
        v_h = jnp.dot(val_ref[...], wv_ref[h], preferred_element_type=jnp.float32) + bv_ref[h]
        v_out_ref[h] = v_h.astype(v_out_ref.dtype)


# ---------------------------------------------------------------------------
# Stage 2: attention with fused Q/O projections; grid over batch blocks only.
# ---------------------------------------------------------------------------
def _attention_kernel(TB, L, H, E, tgt_ref, kT_ref, v_ref, wq_ref, bq_ref,
                      wo_ref, bo_ref, out_ref):
    x = tgt_ref[...].reshape(TB * L, -1)
    out = _attention_math(x, wq_ref[...], bq_ref[...],
                          lambda h: kT_ref[h], lambda h: v_ref[h],
                          wo_ref[...], bo_ref[...], H, E)
    out_ref[...] = out.reshape(TB, L, -1).astype(out_ref.dtype)


# ---------------------------------------------------------------------------
# Fused single-grid-step kernel for tiny problems (no K/V HBM round trip).
# ---------------------------------------------------------------------------
def _fused_kernel(B, L, H, E, tgt_ref, srcT_ref, val_ref, wq_ref, bq_ref,
                  wk_ref, bk_ref, wv_ref, bv_ref, wo_ref, bo_ref, out_ref):
    cdt = srcT_ref.dtype
    kT_all = (jnp.dot(wk_ref[...], srcT_ref[...], preferred_element_type=jnp.float32)
              + bk_ref[...]).astype(cdt)                                      # (H*E, S)
    val = val_ref[...]
    x = tgt_ref[...].reshape(B * L, -1)
    out = _attention_math(
        x, wq_ref[...], bq_ref[...],
        lambda h: kT_all[h * E:(h + 1) * E, :],
        lambda h: (jnp.dot(val, wv_ref[h], preferred_element_type=jnp.float32)
                   + bv_ref[h]).astype(cdt),
        wo_ref[...], bo_ref[...], H, E)
    out_ref[...] = out.reshape(B, L, -1).astype(out_ref.dtype)


# ---------------------------------------------------------------------------
# Wrapper
# ---------------------------------------------------------------------------
def reprogramming_layer(target_embedding, source_embedding, value_embedding, params,
                        n_heads, force_two_stage=False):
    """Pallas implementation of ReprogrammingLayer.forward (dropout in eval mode)."""
    B, L, d_model = target_embedding.shape
    S, d_llm = source_embedding.shape
    wq, bq, wk, bk, wv, bv, wo, bo = params
    H = n_heads
    HE = wq.shape[0]
    E = HE // H
    d_out = wo.shape[0]
    out_dtype = target_embedding.dtype
    scale = 1.0 / math.sqrt(E)
    cdt = jnp.bfloat16  # MXU operand dtype (f32 accumulation everywhere)

    # --- one-time wrapper-side weight prep ------------------------------------
    wq_t = (wq.T * scale).astype(cdt)                               # (d_model, H*E), scale folded
    bq_s = (bq * scale).reshape(1, HE).astype(jnp.float32)
    wk_r = wk.astype(cdt)                                           # (H*E, d_llm): K built transposed
    bk_c = bk.reshape(HE, 1).astype(jnp.float32)
    wv_h = wv.reshape(H, E, d_llm).transpose(0, 2, 1).astype(cdt)   # (H, d_llm, E)
    bv_h = bv.reshape(H, 1, E).astype(jnp.float32)
    wo_t = wo.T.astype(cdt)                                         # (H*E, d_out)
    bo_r = bo.reshape(1, d_out).astype(jnp.float32)

    tgt = target_embedding.astype(cdt)
    srcT = source_embedding.T.astype(cdt)                           # (d_llm, S)
    val = value_embedding.astype(cdt)

    # --- small-problem path: one fused kernel, one grid step -------------------
    n_rows = B * L
    fused_bytes = (2 * (n_rows * d_model + 2 * S * d_llm + d_model * HE + HE * d_llm
                        + H * d_llm * E + HE * d_out + 2 * S * HE + n_rows * HE)
                   + 4 * (n_rows * S + n_rows * d_out))
    use_fused = (not force_two_stage and n_rows <= 512 and S <= 1024
                 and (L % 8 == 0 or B == 1) and fused_bytes <= (8 << 20))
    if use_fused:
        full = lambda *shape: pl.BlockSpec(shape, lambda i: (0,) * len(shape))
        return pl.pallas_call(
            functools.partial(_fused_kernel, B, L, H, E),
            out_shape=jax.ShapeDtypeStruct((B, L, d_out), out_dtype),
            grid=(1,),
            in_specs=[full(B, L, d_model), full(d_llm, S), full(S, d_llm),
                      full(d_model, HE), full(1, HE), full(HE, d_llm), full(HE, 1),
                      full(H, d_llm, E), full(H, 1, E), full(HE, d_out), full(1, d_out)],
            out_specs=full(B, L, d_out),
            compiler_params=pltpu.CompilerParams(
                dimension_semantics=("arbitrary",),
                vmem_limit_bytes=_VMEM_LIMIT),
        )(tgt, srcT, val, wq_t, bq_s, wk_r, bk_c, wv_h, bv_h, wo_t, bo_r)

    # --- stage 1: K/V projections (source/value read exactly once) -------------
    TS = _pick_s_tile(S, d_llm)
    n_s = S // TS
    const_s = lambda *shape: pl.BlockSpec(shape, lambda s: (0,) * len(shape))
    kT_flat, v_hm = pl.pallas_call(
        functools.partial(_kv_projection_kernel, H),
        out_shape=(jax.ShapeDtypeStruct((HE, S), cdt),
                   jax.ShapeDtypeStruct((H, S, E), cdt)),
        grid=(n_s,),
        in_specs=[
            pl.BlockSpec((d_llm, TS), lambda s: (0, s)),    # source^T tile
            pl.BlockSpec((TS, d_llm), lambda s: (s, 0)),    # value tile
            const_s(HE, d_llm),                             # Wk (resident, all heads)
            const_s(HE, 1),                                 # bk
            const_s(H, d_llm, E),                           # Wv head-major (resident)
            const_s(H, 1, E),                               # bv
        ],
        out_specs=(pl.BlockSpec((HE, TS), lambda s: (0, s)),
                   pl.BlockSpec((H, TS, E), lambda s: (0, s, 0))),
        compiler_params=pltpu.CompilerParams(
            dimension_semantics=("parallel",),
            vmem_limit_bytes=_VMEM_LIMIT),
    )(srcT, val, wk_r, bk_c, wv_h, bv_h)
    kT_hm = kT_flat.reshape(H, E, S)   # contiguous relabel, outside the kernel

    # --- stage 2: attention + fused Q/O projections -----------------------------
    TB = _pick_batch_block(B, L, S)
    n_b = B // TB
    const_b = lambda *shape: pl.BlockSpec(shape, lambda b: (0,) * len(shape))
    out = pl.pallas_call(
        functools.partial(_attention_kernel, TB, L, H, E),
        out_shape=jax.ShapeDtypeStruct((B, L, d_out), out_dtype),
        grid=(n_b,),
        in_specs=[
            pl.BlockSpec((TB, L, d_model), lambda b: (b, 0, 0)),  # target block
            const_b(H, E, S),                                     # K^T all heads (resident)
            const_b(H, S, E),                                     # V all heads (resident)
            const_b(d_model, HE),                                 # Wq (resident)
            const_b(1, HE),                                       # bq
            const_b(HE, d_out),                                   # Wo (resident)
            const_b(1, d_out),                                    # bo
        ],
        out_specs=pl.BlockSpec((TB, L, d_out), lambda b: (b, 0, 0)),
        compiler_params=pltpu.CompilerParams(
            dimension_semantics=("parallel",),
            vmem_limit_bytes=_VMEM_LIMIT),
    )(tgt, kT_hm, v_hm, wq_t, bq_s, wo_t, bo_r)
    return out


# ---------------------------------------------------------------------------
# Pure-JAX reference (f32) mirroring the PyTorch forward (dropout = identity)
# ---------------------------------------------------------------------------
def reprogramming_layer_ref(target_embedding, source_embedding, value_embedding, params,
                            n_heads):
    B, L, _ = target_embedding.shape
    S, _ = source_embedding.shape
    wq, bq, wk, bk, wv, bv, wo, bo = params
    H = n_heads
    q = (target_embedding @ wq.T + bq).reshape(B, L, H, -1)
    k = (source_embedding @ wk.T + bk).reshape(S, H, -1)
    v = (value_embedding @ wv.T + bv).reshape(S, H, -1)
    E = q.shape[-1]
    scores = jnp.einsum('blhe,she->bhls', q, k)
    a = jax.nn.softmax(scores / math.sqrt(E), axis=-1)
    out = jnp.einsum('bhls,she->blhe', a, v).reshape(B, L, -1)
    return out @ wo.T + bo


def init_params(key, d_model, n_heads, d_llm, d_keys=None):
    d_keys = d_keys or d_model // n_heads
    HE = d_keys * n_heads
    ks = jax.random.split(key, 8)

    def lin(kw, kb, out_f, in_f):
        bound = 1.0 / math.sqrt(in_f)
        w = jax.random.uniform(kw, (out_f, in_f), jnp.float32, -bound, bound)
        b = jax.random.uniform(kb, (out_f,), jnp.float32, -bound, bound)
        return w, b

    wq, bq = lin(ks[0], ks[1], HE, d_model)
    wk, bk = lin(ks[2], ks[3], HE, d_llm)
    wv, bv = lin(ks[4], ks[5], HE, d_llm)
    wo, bo = lin(ks[6], ks[7], 64, HE)
    return (wq, bq, wk, bk, wv, bv, wo, bo)


if __name__ == "__main__":
    # Small shapes consistent with the module's forward signature.
    B, L, S = 2, 8, 16
    d_model, n_heads, d_llm = 32, 4, 64   # d_keys = d_model // n_heads = 8

    key = jax.random.PRNGKey(0)
    k_t, k_s, k_v, k_p = jax.random.split(key, 4)
    target = jax.random.normal(k_t, (B, L, d_model), jnp.float32)
    source = jax.random.normal(k_s, (S, d_llm), jnp.float32)
    value = jax.random.normal(k_v, (S, d_llm), jnp.float32)
    params = init_params(k_p, d_model, n_heads, d_llm)

    ref = reprogramming_layer_ref(target, source, value, params, n_heads)

    # Fused small-shape path (auto-selected at these sizes).
    out = jax.block_until_ready(reprogramming_layer(target, source, value, params, n_heads))
    assert out.shape == (B, L, 64), out.shape
    max_err = float(jnp.max(jnp.abs(out.astype(jnp.float32) - ref)))
    # bf16 MXU operands + approx reciprocal vs f32 reference -> relaxed tolerance.
    assert max_err < 5e-2, max_err

    # General two-stage path (exercised explicitly so both code paths are verified).
    out2 = jax.block_until_ready(
        reprogramming_layer(target, source, value, params, n_heads, force_two_stage=True))
    max_err2 = float(jnp.max(jnp.abs(out2.astype(jnp.float32) - ref)))
    assert max_err2 < 5e-2, max_err2

    print("KERNEL_OK")
</pallas_src>

<mosaic_0001>
module attributes {stable_mosaic.version = 11 : i64} {
  func.func @_fused_kernel(%arg0: i32, %arg1: memref<2x8x32xbf16, #tpu.memory_space<vmem>>, %arg2: memref<64x16xbf16, #tpu.memory_space<vmem>>, %arg3: memref<16x64xbf16, #tpu.memory_space<vmem>>, %arg4: memref<32x32xbf16, #tpu.memory_space<vmem>>, %arg5: memref<1x32xf32, #tpu.memory_space<vmem>>, %arg6: memref<32x64xbf16, #tpu.memory_space<vmem>>, %arg7: memref<32x1xf32, #tpu.memory_space<vmem>>, %arg8: memref<4x64x8xbf16, #tpu.memory_space<vmem>>, %arg9: memref<4x1x8xf32, #tpu.memory_space<vmem>>, %arg10: memref<32x64xbf16, #tpu.memory_space<vmem>>, %arg11: memref<1x64xf32, #tpu.memory_space<vmem>>, %arg12: memref<2x8x64xf32, #tpu.memory_space<vmem>>) attributes {dimension_semantics = [#tpu.dimension_semantics<arbitrary>], iteration_bounds = array<i64: 1>, scalar_prefetch = 0 : i64, scratch_operands = 0 : i64, tpu.core_type = #tpu.core_type<tc>, window_params = [{pipeline_mode = #tpu.pipeline_mode<synchronous>, transform_indices = @transform_0, window_bounds = array<i64: 2, 8, 32>}, {pipeline_mode = #tpu.pipeline_mode<synchronous>, transform_indices = @transform_1, window_bounds = array<i64: 64, 16>}, {pipeline_mode = #tpu.pipeline_mode<synchronous>, transform_indices = @transform_2, window_bounds = array<i64: 16, 64>}, {pipeline_mode = #tpu.pipeline_mode<synchronous>, transform_indices = @transform_3, window_bounds = array<i64: 32, 32>}, {pipeline_mode = #tpu.pipeline_mode<synchronous>, transform_indices = @transform_4, window_bounds = array<i64: 1, 32>}, {pipeline_mode = #tpu.pipeline_mode<synchronous>, transform_indices = @transform_5, window_bounds = array<i64: 32, 64>}, {pipeline_mode = #tpu.pipeline_mode<synchronous>, transform_indices = @transform_6, window_bounds = array<i64: 32, 1>}, {pipeline_mode = #tpu.pipeline_mode<synchronous>, transform_indices = @transform_7, window_bounds = array<i64: 4, 64, 8>}, {pipeline_mode = #tpu.pipeline_mode<synchronous>, transform_indices = @transform_8, window_bounds = array<i64: 4, 1, 8>}, {pipeline_mode = #tpu.pipeline_mode<synchronous>, transform_indices = @transform_9, window_bounds = array<i64: 32, 64>}, {pipeline_mode = #tpu.pipeline_mode<synchronous>, transform_indices = @transform_10, window_bounds = array<i64: 1, 64>}, {pipeline_mode = #tpu.pipeline_mode<synchronous>, transform_indices = @transform_11, window_bounds = array<i64: 2, 8, 64>}]} {
    %c0 = arith.constant 0 : index
    %c0_0 = arith.constant 0 : index
    %0 = vector.load %arg6[%c0, %c0_0] : memref<32x64xbf16, #tpu.memory_space<vmem>>, vector<32x64xbf16>
    %c0_1 = arith.constant 0 : index
    %c0_2 = arith.constant 0 : index
    %1 = vector.load %arg2[%c0_1, %c0_2] : memref<64x16xbf16, #tpu.memory_space<vmem>>, vector<64x16xbf16>
    %cst = arith.constant dense<0.000000e+00> : vector<32x16xf32>
    %2 = tpu.matmul %0, %1, %cst {dimension_numbers = #tpu.dot_dimension_numbers<[1], [0], [0], [1], [0, 0, 1, 1], [], []>} : vector<32x64xbf16>, vector<64x16xbf16>, vector<32x16xf32> -> vector<32x16xf32>
    %c0_3 = arith.constant 0 : index
    %c0_4 = arith.constant 0 : index
    %3 = vector.load %arg7[%c0_3, %c0_4] : memref<32x1xf32, #tpu.memory_space<vmem>>, vector<32x1xf32>
    %4 = vector.broadcast %3 : vector<32x1xf32> to vector<32x16xf32>
    %5 = arith.addf %2, %4 : vector<32x16xf32>
    %6 = arith.truncf %5 : vector<32x16xf32> to vector<32x16xbf16>
    %c0_5 = arith.constant 0 : index
    %c0_6 = arith.constant 0 : index
    %7 = vector.load %arg3[%c0_5, %c0_6] : memref<16x64xbf16, #tpu.memory_space<vmem>>, vector<16x64xbf16>
    %c0_7 = arith.constant 0 : index
    %c0_8 = arith.constant 0 : index
    %c0_9 = arith.constant 0 : index
    %8 = vector.load %arg1[%c0_7, %c0_8, %c0_9] : memref<2x8x32xbf16, #tpu.memory_space<vmem>>, vector<2x8x32xbf16>
    %9 = vector.shape_cast %8 : vector<2x8x32xbf16> to vector<16x32xbf16>
    %c0_10 = arith.constant 0 : index
    %c0_11 = arith.constant 0 : index
    %10 = vector.load %arg4[%c0_10, %c0_11] : memref<32x32xbf16, #tpu.memory_space<vmem>>, vector<32x32xbf16>
    %c0_12 = arith.constant 0 : index
    %c0_13 = arith.constant 0 : index
    %11 = vector.load %arg5[%c0_12, %c0_13] : memref<1x32xf32, #tpu.memory_space<vmem>>, vector<1x32xf32>
    %c0_14 = arith.constant 0 : index
    %c0_15 = arith.constant 0 : index
    %12 = vector.load %arg10[%c0_14, %c0_15] : memref<32x64xbf16, #tpu.memory_space<vmem>>, vector<32x64xbf16>
    %c0_16 = arith.constant 0 : index
    %c0_17 = arith.constant 0 : index
    %13 = vector.load %arg11[%c0_16, %c0_17] : memref<1x64xf32, #tpu.memory_space<vmem>>, vector<1x64xf32>
    %cst_18 = arith.constant dense<0.000000e+00> : vector<16x32xf32>
    %14 = tpu.matmul %9, %10, %cst_18 {dimension_numbers = #tpu.dot_dimension_numbers<[1], [0], [0], [1], [0, 0, 1, 1], [], []>} : vector<16x32xbf16>, vector<32x32xbf16>, vector<16x32xf32> -> vector<16x32xf32>
    %15 = vector.broadcast %11 : vector<1x32xf32> to vector<16x32xf32>
    %16 = arith.addf %14, %15 : vector<16x32xf32>
    %17 = vector.extract_strided_slice %16 {offsets = [0, 0], sizes = [16, 8], strides = [1, 1]} : vector<16x32xf32> to vector<16x8xf32>
    %18 = arith.truncf %17 : vector<16x8xf32> to vector<16x8xbf16>
    %19 = vector.extract_strided_slice %6 {offsets = [0, 0], sizes = [8, 16], strides = [1, 1]} : vector<32x16xbf16> to vector<8x16xbf16>
    %cst_19 = arith.constant dense<0.000000e+00> : vector<16x16xf32>
    %20 = tpu.matmul %18, %19, %cst_19 {dimension_numbers = #tpu.dot_dimension_numbers<[1], [0], [0], [1], [0, 0, 1, 1], [], []>} : vector<16x8xbf16>, vector<8x16xbf16>, vector<16x16xf32> -> vector<16x16xf32>
    %cst_20 = arith.constant dense<0xFF800000> : vector<16xf32>
    %21 = vector.multi_reduction <maximumf>, %20, %cst_20 [1] : vector<16x16xf32> to vector<16xf32>
    %22 = vector.shape_cast %21 : vector<16xf32> to vector<16x1xf32>
    %23 = vector.broadcast %22 : vector<16x1xf32> to vector<16x16xf32>
    %24 = arith.subf %20, %23 : vector<16x16xf32>
    %25 = math.exp %24 : vector<16x16xf32>
    %cst_21 = arith.constant dense<0.000000e+00> : vector<16xf32>
    %26 = vector.multi_reduction <add>, %25, %cst_21 [1] : vector<16x16xf32> to vector<16xf32>
    %27 = vector.shape_cast %26 : vector<16xf32> to vector<16x1xf32>
    %28 = tpu.reciprocal %27 {approx = true} : vector<16x1xf32> -> vector<16x1xf32>
    %29 = vector.broadcast %28 : vector<16x1xf32> to vector<16x16xf32>
    %30 = arith.mulf %25, %29 : vector<16x16xf32>
    %31 = arith.truncf %30 : vector<16x16xf32> to vector<16x16xbf16>
    %c0_22 = arith.constant 0 : index
    %c0_23 = arith.constant 0 : index
    %c0_24 = arith.constant 0 : index
    %32 = vector.load %arg8[%c0_22, %c0_23, %c0_24] : memref<4x64x8xbf16, #tpu.memory_space<vmem>>, vector<1x64x8xbf16>
    %33 = vector.shape_cast %32 : vector<1x64x8xbf16> to vector<64x8xbf16>
    %cst_25 = arith.constant dense<0.000000e+00> : vector<16x8xf32>
    %34 = tpu.matmul %7, %33, %cst_25 {dimension_numbers = #tpu.dot_dimension_numbers<[1], [0], [0], [1], [0, 0, 1, 1], [], []>} : vector<16x64xbf16>, vector<64x8xbf16>, vector<16x8xf32> -> vector<16x8xf32>
    %c0_26 = arith.constant 0 : index
    %c0_27 = arith.constant 0 : index
    %c0_28 = arith.constant 0 : index
    %35 = vector.load %arg9[%c0_26, %c0_27, %c0_28] : memref<4x1x8xf32, #tpu.memory_space<vmem>>, vector<1x1x8xf32>
    %36 = vector.shape_cast %35 : vector<1x1x8xf32> to vector<1x8xf32>
    %37 = vector.broadcast %36 : vector<1x8xf32> to vector<16x8xf32>
    %38 = arith.addf %34, %37 : vector<16x8xf32>
    %39 = arith.truncf %38 : vector<16x8xf32> to vector<16x8xbf16>
    %cst_29 = arith.constant dense<0.000000e+00> : vector<16x8xf32>
    %40 = tpu.matmul %31, %39, %cst_29 {dimension_numbers = #tpu.dot_dimension_numbers<[1], [0], [0], [1], [0, 0, 1, 1], [], []>} : vector<16x16xbf16>, vector<16x8xbf16>, vector<16x8xf32> -> vector<16x8xf32>
    %41 = vector.extract_strided_slice %16 {offsets = [0, 8], sizes = [16, 8], strides = [1, 1]} : vector<16x32xf32> to vector<16x8xf32>
    %42 = arith.truncf %41 : vector<16x8xf32> to vector<16x8xbf16>
    %43 = vector.extract_strided_slice %6 {offsets = [8, 0], sizes = [8, 16], strides = [1, 1]} : vector<32x16xbf16> to vector<8x16xbf16>
    %cst_30 = arith.constant dense<0.000000e+00> : vector<16x16xf32>
    %44 = tpu.matmul %42, %43, %cst_30 {dimension_numbers = #tpu.dot_dimension_numbers<[1], [0], [0], [1], [0, 0, 1, 1], [], []>} : vector<16x8xbf16>, vector<8x16xbf16>, vector<16x16xf32> -> vector<16x16xf32>
    %cst_31 = arith.constant dense<0xFF800000> : vector<16xf32>
    %45 = vector.multi_reduction <maximumf>, %44, %cst_31 [1] : vector<16x16xf32> to vector<16xf32>
    %46 = vector.shape_cast %45 : vector<16xf32> to vector<16x1xf32>
    %47 = vector.broadcast %46 : vector<16x1xf32> to vector<16x16xf32>
    %48 = arith.subf %44, %47 : vector<16x16xf32>
    %49 = math.exp %48 : vector<16x16xf32>
    %cst_32 = arith.constant dense<0.000000e+00> : vector<16xf32>
    %50 = vector.multi_reduction <add>, %49, %cst_32 [1] : vector<16x16xf32> to vector<16xf32>
    %51 = vector.shape_cast %50 : vector<16xf32> to vector<16x1xf32>
    %52 = tpu.reciprocal %51 {approx = true} : vector<16x1xf32> -> vector<16x1xf32>
    %53 = vector.broadcast %52 : vector<16x1xf32> to vector<16x16xf32>
    %54 = arith.mulf %49, %53 : vector<16x16xf32>
    %55 = arith.truncf %54 : vector<16x16xf32> to vector<16x16xbf16>
    %c1 = arith.constant 1 : index
    %c0_33 = arith.constant 0 : index
    %c0_34 = arith.constant 0 : index
    %56 = vector.load %arg8[%c1, %c0_33, %c0_34] : memref<4x64x8xbf16, #tpu.memory_space<vmem>>, vector<1x64x8xbf16>
    %57 = vector.shape_cast %56 : vector<1x64x8xbf16> to vector<64x8xbf16>
    %cst_35 = arith.constant dense<0.000000e+00> : vector<16x8xf32>
    %58 = tpu.matmul %7, %57, %cst_35 {dimension_numbers = #tpu.dot_dimension_numbers<[1], [0], [0], [1], [0, 0, 1, 1], [], []>} : vector<16x64xbf16>, vector<64x8xbf16>, vector<16x8xf32> -> vector<16x8xf32>
    %c1_36 = arith.constant 1 : index
    %c0_37 = arith.constant 0 : index
    %c0_38 = arith.constant 0 : index
    %59 = vector.load %arg9[%c1_36, %c0_37, %c0_38] : memref<4x1x8xf32, #tpu.memory_space<vmem>>, vector<1x1x8xf32>
    %60 = vector.shape_cast %59 : vector<1x1x8xf32> to vector<1x8xf32>
    %61 = vector.broadcast %60 : vector<1x8xf32> to vector<16x8xf32>
    %62 = arith.addf %58, %61 : vector<16x8xf32>
    %63 = arith.truncf %62 : vector<16x8xf32> to vector<16x8xbf16>
    %cst_39 = arith.constant dense<0.000000e+00> : vector<16x8xf32>
    %64 = tpu.matmul %55, %63, %cst_39 {dimension_numbers = #tpu.dot_dimension_numbers<[1], [0], [0], [1], [0, 0, 1, 1], [], []>} : vector<16x16xbf16>, vector<16x8xbf16>, vector<16x8xf32> -> vector<16x8xf32>
    %65 = vector.extract_strided_slice %16 {offsets = [0, 16], sizes = [16, 8], strides = [1, 1]} : vector<16x32xf32> to vector<16x8xf32>
    %66 = arith.truncf %65 : vector<16x8xf32> to vector<16x8xbf16>
    %67 = vector.extract_strided_slice %6 {offsets = [16, 0], sizes = [8, 16], strides = [1, 1]} : vector<32x16xbf16> to vector<8x16xbf16>
    %cst_40 = arith.constant dense<0.000000e+00> : vector<16x16xf32>
    %68 = tpu.matmul %66, %67, %cst_40 {dimension_numbers = #tpu.dot_dimension_numbers<[1], [0], [0], [1], [0, 0, 1, 1], [], []>} : vector<16x8xbf16>, vector<8x16xbf16>, vector<16x16xf32> -> vector<16x16xf32>
    %cst_41 = arith.constant dense<0xFF800000> : vector<16xf32>
    %69 = vector.multi_reduction <maximumf>, %68, %cst_41 [1] : vector<16x16xf32> to vector<16xf32>
    %70 = vector.shape_cast %69 : vector<16xf32> to vector<16x1xf32>
    %71 = vector.broadcast %70 : vector<16x1xf32> to vector<16x16xf32>
    %72 = arith.subf %68, %71 : vector<16x16xf32>
    %73 = math.exp %72 : vector<16x16xf32>
    %cst_42 = arith.constant dense<0.000000e+00> : vector<16xf32>
    %74 = vector.multi_reduction <add>, %73, %cst_42 [1] : vector<16x16xf32> to vector<16xf32>
    %75 = vector.shape_cast %74 : vector<16xf32> to vector<16x1xf32>
    %76 = tpu.reciprocal %75 {approx = true} : vector<16x1xf32> -> vector<16x1xf32>
    %77 = vector.broadcast %76 : vector<16x1xf32> to vector<16x16xf32>
    %78 = arith.mulf %73, %77 : vector<16x16xf32>
    %79 = arith.truncf %78 : vector<16x16xf32> to vector<16x16xbf16>
    %c2 = arith.constant 2 : index
    %c0_43 = arith.constant 0 : index
    %c0_44 = arith.constant 0 : index
    %80 = vector.load %arg8[%c2, %c0_43, %c0_44] : memref<4x64x8xbf16, #tpu.memory_space<vmem>>, vector<1x64x8xbf16>
    %81 = vector.shape_cast %80 : vector<1x64x8xbf16> to vector<64x8xbf16>
    %cst_45 = arith.constant dense<0.000000e+00> : vector<16x8xf32>
    %82 = tpu.matmul %7, %81, %cst_45 {dimension_numbers = #tpu.dot_dimension_numbers<[1], [0], [0], [1], [0, 0, 1, 1], [], []>} : vector<16x64xbf16>, vector<64x8xbf16>, vector<16x8xf32> -> vector<16x8xf32>
    %c2_46 = arith.constant 2 : index
    %c0_47 = arith.constant 0 : index
    %c0_48 = arith.constant 0 : index
    %83 = vector.load %arg9[%c2_46, %c0_47, %c0_48] : memref<4x1x8xf32, #tpu.memory_space<vmem>>, vector<1x1x8xf32>
    %84 = vector.shape_cast %83 : vector<1x1x8xf32> to vector<1x8xf32>
    %85 = vector.broadcast %84 : vector<1x8xf32> to vector<16x8xf32>
    %86 = arith.addf %82, %85 : vector<16x8xf32>
    %87 = arith.truncf %86 : vector<16x8xf32> to vector<16x8xbf16>
    %cst_49 = arith.constant dense<0.000000e+00> : vector<16x8xf32>
    %88 = tpu.matmul %79, %87, %cst_49 {dimension_numbers = #tpu.dot_dimension_numbers<[1], [0], [0], [1], [0, 0, 1, 1], [], []>} : vector<16x16xbf16>, vector<16x8xbf16>, vector<16x8xf32> -> vector<16x8xf32>
    %89 = vector.extract_strided_slice %16 {offsets = [0, 24], sizes = [16, 8], strides = [1, 1]} : vector<16x32xf32> to vector<16x8xf32>
    %90 = arith.truncf %89 : vector<16x8xf32> to vector<16x8xbf16>
    %91 = vector.extract_strided_slice %6 {offsets = [24, 0], sizes = [8, 16], strides = [1, 1]} : vector<32x16xbf16> to vector<8x16xbf16>
    %cst_50 = arith.constant dense<0.000000e+00> : vector<16x16xf32>
    %92 = tpu.matmul %90, %91, %cst_50 {dimension_numbers = #tpu.dot_dimension_numbers<[1], [0], [0], [1], [0, 0, 1, 1], [], []>} : vector<16x8xbf16>, vector<8x16xbf16>, vector<16x16xf32> -> vector<16x16xf32>
    %cst_51 = arith.constant dense<0xFF800000> : vector<16xf32>
    %93 = vector.multi_reduction <maximumf>, %92, %cst_51 [1] : vector<16x16xf32> to vector<16xf32>
    %94 = vector.shape_cast %93 : vector<16xf32> to vector<16x1xf32>
    %95 = vector.broadcast %94 : vector<16x1xf32> to vector<16x16xf32>
    %96 = arith.subf %92, %95 : vector<16x16xf32>
    %97 = math.exp %96 : vector<16x16xf32>
    %cst_52 = arith.constant dense<0.000000e+00> : vector<16xf32>
    %98 = vector.multi_reduction <add>, %97, %cst_52 [1] : vector<16x16xf32> to vector<16xf32>
    %99 = vector.shape_cast %98 : vector<16xf32> to vector<16x1xf32>
    %100 = tpu.reciprocal %99 {approx = true} : vector<16x1xf32> -> vector<16x1xf32>
    %101 = vector.broadcast %100 : vector<16x1xf32> to vector<16x16xf32>
    %102 = arith.mulf %97, %101 : vector<16x16xf32>
    %103 = arith.truncf %102 : vector<16x16xf32> to vector<16x16xbf16>
    %c3 = arith.constant 3 : index
    %c0_53 = arith.constant 0 : index
    %c0_54 = arith.constant 0 : index
    %104 = vector.load %arg8[%c3, %c0_53, %c0_54] : memref<4x64x8xbf16, #tpu.memory_space<vmem>>, vector<1x64x8xbf16>
    %105 = vector.shape_cast %104 : vector<1x64x8xbf16> to vector<64x8xbf16>
    %cst_55 = arith.constant dense<0.000000e+00> : vector<16x8xf32>
    %106 = tpu.matmul %7, %105, %cst_55 {dimension_numbers = #tpu.dot_dimension_numbers<[1], [0], [0], [1], [0, 0, 1, 1], [], []>} : vector<16x64xbf16>, vector<64x8xbf16>, vector<16x8xf32> -> vector<16x8xf32>
    %c3_56 = arith.constant 3 : index
    %c0_57 = arith.constant 0 : index
    %c0_58 = arith.constant 0 : index
    %107 = vector.load %arg9[%c3_56, %c0_57, %c0_58] : memref<4x1x8xf32, #tpu.memory_space<vmem>>, vector<1x1x8xf32>
    %108 = vector.shape_cast %107 : vector<1x1x8xf32> to vector<1x8xf32>
    %109 = vector.broadcast %108 : vector<1x8xf32> to vector<16x8xf32>
    %110 = arith.addf %106, %109 : vector<16x8xf32>
    %111 = arith.truncf %110 : vector<16x8xf32> to vector<16x8xbf16>
    %cst_59 = arith.constant dense<0.000000e+00> : vector<16x8xf32>
    %112 = tpu.matmul %103, %111, %cst_59 {dimension_numbers = #tpu.dot_dimension_numbers<[1], [0], [0], [1], [0, 0, 1, 1], [], []>} : vector<16x16xbf16>, vector<16x8xbf16>, vector<16x8xf32> -> vector<16x8xf32>
    %113 = tpu.concatenate %40, %64, %88, %112 in 1 : vector<16x8xf32>, vector<16x8xf32>, vector<16x8xf32>, vector<16x8xf32> -> vector<16x32xf32>
    %114 = arith.truncf %113 : vector<16x32xf32> to vector<16x32xbf16>
    %cst_60 = arith.constant dense<0.000000e+00> : vector<16x64xf32>
    %115 = tpu.matmul %114, %12, %cst_60 {dimension_numbers = #tpu.dot_dimension_numbers<[1], [0], [0], [1], [0, 0, 1, 1], [], []>} : vector<16x32xbf16>, vector<32x64xbf16>, vector<16x64xf32> -> vector<16x64xf32>
    %116 = vector.broadcast %13 : vector<1x64xf32> to vector<16x64xf32>
    %117 = arith.addf %115, %116 : vector<16x64xf32>
    %118 = vector.shape_cast %117 : vector<16x64xf32> to vector<2x8x64xf32>
    %c0_61 = arith.constant 0 : index
    %c0_62 = arith.constant 0 : index
    %c0_63 = arith.constant 0 : index
    %119 = vector.load %arg12[%c0_61, %c0_62, %c0_63] : memref<2x8x64xf32, #tpu.memory_space<vmem>>, vector<2x8x64xf32>
    tpu.vector_store %arg12[%c0_61, %c0_62, %c0_63], %118 {strides = array<i32>} : memref<2x8x64xf32, #tpu.memory_space<vmem>>, vector<2x8x64xf32>,
    return
  }
  func.func @transform_0(%arg0: i32) -> (i32, i32, i32) {
    %c0_i32 = arith.constant 0 : i32
    %c0_i32_0 = arith.constant 0 : i32
    %c0_i32_1 = arith.constant 0 : i32
    %c0_i32_2 = arith.constant 0 : i32
    return %c0_i32, %c0_i32_0, %c0_i32_1 : i32, i32, i32
  }
  func.func @transform_1(%arg0: i32) -> (i32, i32) {
    %c0_i32 = arith.constant 0 : i32
    %c0_i32_0 = arith.constant 0 : i32
    %c0_i32_1 = arith.constant 0 : i32
    return %c0_i32, %c0_i32_0 : i32, i32
  }
  func.func @transform_2(%arg0: i32) -> (i32, i32) {
    %c0_i32 = arith.constant 0 : i32
    %c0_i32_0 = arith.constant 0 : i32
    %c0_i32_1 = arith.constant 0 : i32
    return %c0_i32, %c0_i32_0 : i32, i32
  }
  func.func @transform_3(%arg0: i32) -> (i32, i32) {
    %c0_i32 = arith.constant 0 : i32
    %c0_i32_0 = arith.constant 0 : i32
    %c0_i32_1 = arith.constant 0 : i32
    return %c0_i32, %c0_i32_0 : i32, i32
  }
  func.func @transform_4(%arg0: i32) -> (i32, i32) {
    %c0_i32 = arith.constant 0 : i32
    %c0_i32_0 = arith.constant 0 : i32
    %c0_i32_1 = arith.constant 0 : i32
    return %c0_i32, %c0_i32_0 : i32, i32
  }
  func.func @transform_5(%arg0: i32) -> (i32, i32) {
    %c0_i32 = arith.constant 0 : i32
    %c0_i32_0 = arith.constant 0 : i32
    %c0_i32_1 = arith.constant 0 : i32
    return %c0_i32, %c0_i32_0 : i32, i32
  }
  func.func @transform_6(%arg0: i32) -> (i32, i32) {
    %c0_i32 = arith.constant 0 : i32
    %c0_i32_0 = arith.constant 0 : i32
    %c0_i32_1 = arith.constant 0 : i32
    return %c0_i32, %c0_i32_0 : i32, i32
  }
  func.func @transform_7(%arg0: i32) -> (i32, i32, i32) {
    %c0_i32 = arith.constant 0 : i32
    %c0_i32_0 = arith.constant 0 : i32
    %c0_i32_1 = arith.constant 0 : i32
    %c0_i32_2 = arith.constant 0 : i32
    return %c0_i32, %c0_i32_0, %c0_i32_1 : i32, i32, i32
  }
  func.func @transform_8(%arg0: i32) -> (i32, i32, i32) {
    %c0_i32 = arith.constant 0 : i32
    %c0_i32_0 = arith.constant 0 : i32
    %c0_i32_1 = arith.constant 0 : i32
    %c0_i32_2 = arith.constant 0 : i32
    return %c0_i32, %c0_i32_0, %c0_i32_1 : i32, i32, i32
  }
  func.func @transform_9(%arg0: i32) -> (i32, i32) {
    %c0_i32 = arith.constant 0 : i32
    %c0_i32_0 = arith.constant 0 : i32
    %c0_i32_1 = arith.constant 0 : i32
    return %c0_i32, %c0_i32_0 : i32, i32
  }
  func.func @transform_10(%arg0: i32) -> (i32, i32) {
    %c0_i32 = arith.constant 0 : i32
    %c0_i32_0 = arith.constant 0 : i32
    %c0_i32_1 = arith.constant 0 : i32
    return %c0_i32, %c0_i32_0 : i32, i32
  }
  func.func @transform_11(%arg0: i32) -> (i32, i32, i32) {
    %c0_i32 = arith.constant 0 : i32
    %c0_i32_0 = arith.constant 0 : i32
    %c0_i32_1 = arith.constant 0 : i32
    %c0_i32_2 = arith.constant 0 : i32
    return %c0_i32, %c0_i32_0, %c0_i32_1 : i32, i32, i32
  }
}

</mosaic_0001>

<llo_original>
// kernel: tpu_custom_call.1
$region0: #{tpu_custom_call.1}
  #allocation0 [shape = 'u32[]', space=smem, size = 0x4, offset = 0x4, fixed_abs, tag = 'smem constant byte address 0x4 - core index']
  #allocation1 [shape = 'u32[72,128]{1,0:T(1,128)}', space=vmem, size = 0x9000, scoped, tag = 'internal scratch']
  %s0 = inlined_call_operand.vmem [shape: bf16[2,8,32], index: 0, kind: input, shape index: {}]
  %s1 = inlined_call_operand.vmem [shape: bf16[64,16], index: 1, kind: input, shape index: {}]
  %s2 = inlined_call_operand.vmem [shape: bf16[16,64], index: 2, kind: input, shape index: {}]
  %s3 = inlined_call_operand.vmem [shape: bf16[32,32], index: 3, kind: input, shape index: {}]
  %s4 = inlined_call_operand.vmem [shape: f32[1,32], index: 4, kind: input, shape index: {}]
  %s5 = inlined_call_operand.vmem [shape: bf16[32,64], index: 5, kind: input, shape index: {}]
  %s6 = inlined_call_operand.vmem [shape: f32[32,1], index: 6, kind: input, shape index: {}]
  %s7 = inlined_call_operand.vmem [shape: bf16[4,64,8], index: 7, kind: input, shape index: {}]
  %s8 = inlined_call_operand.vmem [shape: f32[4,1,8], index: 8, kind: input, shape index: {}]
  %s9 = inlined_call_operand.vmem [shape: bf16[32,64], index: 9, kind: input, shape index: {}]
  %s10 = inlined_call_operand.vmem [shape: f32[1,64], index: 10, kind: input, shape index: {}]
  %s11 = inlined_call_operand.hbm [shape: f32[2,8,64], index: 11, kind: output, shape index: {}]
  %s12 = sld [smem:[#allocation0]]
  $region54: #{tpu_custom_call.1} parent=0
    _
  %s14 = ssub.s32 1, %s12
  %s15 = scalar_select 0, %s14, %s12
  $region1: #{tpu_custom_call.1} parent=0
    #allocation2 [shape = 'u8[8192]{0}', space=vmem, size = 0x2000, scoped, tag = 'output window, operand 0, single buffered']
    #allocation3 [shape = 's32[1]{0}', space=sflag, size = 0x4, scoped, tag = 'scoped memory for tpu_custom_call.1']
    %16 = vsyncpa [#allocation3], 0
    // Predicated region
    $region2: #{tpu_custom_call.1} parent=1 // pred_check
      _
    $region3: #{tpu_custom_call.1} parent=1 // pred_check_branch
      %18 = sbr.rel (0) target = $region5
    $region4: #{tpu_custom_call.1} parent=1 // pred_region
      _
    $region5: #{tpu_custom_call.1} parent=1 // pred_fallthru
      _
    // Predicated region
    $region6: #{tpu_custom_call.1} parent=1 // pred_check
      _
    $region7: #{tpu_custom_call.1} parent=1 // pred_check_branch
      %20 = sbr.rel (0) target = $region9
    $region8: #{tpu_custom_call.1} parent=1 // pred_region
      _
    $region9: #{tpu_custom_call.1} parent=1 // pred_fallthru
      _
    // Predicated region
    $region10: #{tpu_custom_call.1} parent=1 // pred_check
      _
    $region11: #{tpu_custom_call.1} parent=1 // pred_check_branch
      %22 = sbr.rel (0) target = $region13
    $region12: #{tpu_custom_call.1} parent=1 // pred_region
      _
    $region13: #{tpu_custom_call.1} parent=1 // pred_fallthru
      _
    // Predicated region
    $region14: #{tpu_custom_call.1} parent=1 // pred_check
      _
    $region15: #{tpu_custom_call.1} parent=1 // pred_check_branch
      %24 = sbr.rel (0) target = $region17
    $region16: #{tpu_custom_call.1} parent=1 // pred_region
      _
    $region17: #{tpu_custom_call.1} parent=1 // pred_fallthru
      _
    // Predicated region
    $region18: #{tpu_custom_call.1} parent=1 // pred_check
      _
    $region19: #{tpu_custom_call.1} parent=1 // pred_check_branch
      %26 = sbr.rel (0) target = $region21
    $region20: #{tpu_custom_call.1} parent=1 // pred_region
      _
    $region21: #{tpu_custom_call.1} parent=1 // pred_fallthru
      _
    // Predicated region
    $region22: #{tpu_custom_call.1} parent=1 // pred_check
      _
    $region23: #{tpu_custom_call.1} parent=1 // pred_check_branch
      %28 = sbr.rel (0) target = $region25
    $region24: #{tpu_custom_call.1} parent=1 // pred_region
      _
    $region25: #{tpu_custom_call.1} parent=1 // pred_fallthru
      _
    // Predicated region
    $region26: #{tpu_custom_call.1} parent=1 // pred_check
      _
    $region27: #{tpu_custom_call.1} parent=1 // pred_check_branch
      %30 = sbr.rel (0) target = $region29
    $region28: #{tpu_custom_call.1} parent=1 // pred_region
      _
    $region29: #{tpu_custom_call.1} parent=1 // pred_fallthru
      _
    // Predicated region
    $region30: #{tpu_custom_call.1} parent=1 // pred_check
      _
    $region31: #{tpu_custom_call.1} parent=1 // pred_check_branch
      %32 = sbr.rel (0) target = $region33
    $region32: #{tpu_custom_call.1} parent=1 // pred_region
      _
    $region33: #{tpu_custom_call.1} parent=1 // pred_fallthru
      _
    // Predicated region
    $region34: #{tpu_custom_call.1} parent=1 // pred_check
      _
    $region35: #{tpu_custom_call.1} parent=1 // pred_check_branch
      %34 = sbr.rel (0) target = $region37
    $region36: #{tpu_custom_call.1} parent=1 // pred_region
      _
    $region37: #{tpu_custom_call.1} parent=1 // pred_fallthru
      _
    // Predicated region
    $region38: #{tpu_custom_call.1} parent=1 // pred_check
      _
    $region39: #{tpu_custom_call.1} parent=1 // pred_check_branch
      %36 = sbr.rel (0) target = $region41
    $region40: #{tpu_custom_call.1} parent=1 // pred_region
      _
    $region41: #{tpu_custom_call.1} parent=1 // pred_fallthru
      _
    // Predicated region
    $region42: #{tpu_custom_call.1} parent=1 // pred_check
      _
    $region43: #{tpu_custom_call.1} parent=1 // pred_check_branch
      %38 = sbr.rel (0) target = $region45
    $region44: #{tpu_custom_call.1} parent=1 // pred_region
      _
    $region45: #{tpu_custom_call.1} parent=1 // pred_fallthru
      _
    %v40 = vld [vmem:[%s5] sm:$0xf]
    %v41 = vld [vmem:[%s5 + $0x4] sm:$0xf]
    %v42 = vld [vmem:[%s5 + $0x8] sm:$0xf]
    %v43 = vld [vmem:[%s5 + $0xc] sm:$0xf]
    %v44 = vld [vmem:[%s1] sm:$0xf]
    %v45 = vld [vmem:[%s1 + $0x4] sm:$0xf]
    %v46 = vld [vmem:[%s1 + $0x8] sm:$0xf]
    %v47 = vld [vmem:[%s1 + $0xc] sm:$0xf]
    %v48 = vld [vmem:[%s1 + $0x10] sm:$0xf]
    %v49 = vld [vmem:[%s1 + $0x14] sm:$0xf]
    %v50 = vld [vmem:[%s1 + $0x18] sm:$0xf]
    %v51 = vld [vmem:[%s1 + $0x1c] sm:$0xf]
    %v52 = vld [vmem:[%s6] sm:$0xff]
    %v53 = vld [vmem:[%s6 + $0x8] sm:$0xff]
    %v54 = vld [vmem:[%s6 + $0x10] sm:$0xff]
    %v55 = vld [vmem:[%s6 + $0x18] sm:$0xff]
    %57 = vset.pattern.permute.xlu0 0
    %58 = vperm.xlu0 %57, %v52
    %v59 = vpop.permute.xlu0 %58
    %62 = vset.pattern.permute.xlu0 0
    %63 = vperm.xlu0 %62, %v53
    %v64 = vpop.permute.xlu0 %63
    %67 = vset.pattern.permute.xlu0 0
    %68 = vperm.xlu0 %67, %v54
    %v69 = vpop.permute.xlu0 %68
    %72 = vset.pattern.permute.xlu0 0
    %73 = vperm.xlu0 %72, %v55
    %v74 = vpop.permute.xlu0 %73
    %v80 = vunpack.c.l.b16 %v40
    %v81 = vunpack.c.l.b16 %v41
    %v82 = vunpack.c.l.b16 %v42
    %v83 = vunpack.c.l.b16 %v43
    %v84 = vpack.c.b16 %v81, %v80
    %v85 = vpack.c.b16 %v83, %v82
    %v94 = vunpack.c.l.b16 %v44
    %v95 = vunpack.c.l.b16 %v45
    %v96 = vunpack.c.l.b16 %v46
    %v97 = vunpack.c.l.b16 %v47
    %v98 = vunpack.c.l.b16 %v48
    %v99 = vunpack.c.l.b16 %v49
    %v100 = vunpack.c.l.b16 %v50
    %v101 = vunpack.c.l.b16 %v51
    %v102 = vpack.c.b16 %v95, %v94
    %v103 = vpack.c.b16 %v97, %v96
    %v104 = vpack.c.b16 %v99, %v98
    %v105 = vpack.c.b16 %v101, %v100
    %vm110 = vcmask 523264
    %v112 = vsel %vm110, %v84, 0
    %v115 = vsel %vm110, %v85, 0
    %117 = vmatpush.bf16.msra.mxu0 0
    %118 = vmatpush.bf16.msra.mxu0 0
    %119 = vmatpush.bf16.msra.mxu0 0
    %120 = vmatpush.bf16.msra.mxu0 0
    %121 = vmatpush.bf16.msra.mxu0 %v105
    %122 = vmatpush.bf16.msra.mxu0 %v104
    %123 = vmatpush.bf16.msra.mxu0 %v103
    %124 = vmatpush.bf16.msra.mxu0 %v102
    %125 = vmatmul.bf16.gmra.mxu0 %v112
    %v126 = vpop.f32.mrf.mxu0
    %v127 = vadd.f32 %v59, %v126
    %v128 = vpop.f32.mrf.mxu0
    %v129 = vadd.f32 %v64, %v128
    %130 = vmatmul.bf16.gmra.mxu0 %v115
    %v131 = vpop.f32.mrf.mxu0
    %v132 = vadd.f32 %v69, %v131
    %v133 = vpop.f32.mrf.mxu0
    %v134 = vadd.f32 %v74, %v133
    %135 = vdwg.mxu0
    %v136 = vpack.c.bf16 %v127, %v127
    %v137 = vpack.c.bf16 %v129, %v129
    %v138 = vpack.c.bf16 %v132, %v132
    %v139 = vpack.c.bf16 %v134, %v134
    %v140 = vld [vmem:[%s2] sm:$0xf]
    %v141 = vld [vmem:[%s2 + $0x4] sm:$0xf]
    %v142 = vld [vmem:[%s0] sm:$0xf]
    %v143 = vld [vmem:[%s0 + $0x4] sm:$0xf]
    %v144 = vld [vmem:[%s3] sm:$0xf]
    %v145 = vld [vmem:[%s3 + $0x4] sm:$0xf]
    %v146 = vld [vmem:[%s3 + $0x8] sm:$0xf]
    %v147 = vld [vmem:[%s3 + $0xc] sm:$0xf]
    %v148 = vld [vmem:[%s4] sm:$0x1]
    %v149 = vld [vmem:[%s9] sm:$0xf]
    %v150 = vld [vmem:[%s9 + $0x4] sm:$0xf]
    %v151 = vld [vmem:[%s9 + $0x8] sm:$0xf]
    %v152 = vld [vmem:[%s9 + $0xc] sm:$0xf]
    %v153 = vld [vmem:[%s10] sm:$0x1]
    %v155 = vperm.slane %v148, 0
    %v159 = vunpack.c.l.b16 %v142
    %v160 = vunpack.c.l.b16 %v143
    %v161 = vpack.c.b16 %v160, %v159
    %v166 = vunpack.c.l.b16 %v144
    %v167 = vunpack.c.l.b16 %v145
    %v168 = vunpack.c.l.b16 %v146
    %v169 = vunpack.c.l.b16 %v147
    %v170 = vpack.c.b16 %v167, %v166
    %v171 = vpack.c.b16 %v169, %v168
    %vm174 = vcmask 261120
    %v176 = vsel %vm174, %v161, 0
    %178 = vmatpush.bf16.msra.mxu0 0
    %179 = vmatpush.bf16.msra.mxu0 0
    %180 = vmatpush.bf16.msra.mxu0 0
    %181 = vmatpush.bf16.msra.mxu0 0
    %182 = vmatpush.bf16.msra.mxu0 0
    %183 = vmatpush.bf16.msra.mxu0 0
    %184 = vmatpush.bf16.msra.mxu0 %v171
    %185 = vmatpush.bf16.msra.mxu0 %v170
    %186 = vmatmul.bf16.gmra.mxu0 %v176
    %v187 = vpop.f32.mrf.mxu0
    %v188 = vadd.f32 %v155, %v187
    %v189 = vpop.f32.mrf.mxu0
    %v190 = vadd.f32 %v155, %v189
    %191 = vdwg.mxu0
    %v192 = vpack.c.bf16 %v190, %v188
    %vm193 = vcmask 64512
    %v195 = vsel %vm193, %v192, 0
    %vm197 = vcmask 1043456
    %v199 = vsel %vm197, %v136, 0
    %201 = vmatpush.bf16.msra.mxu0 0
    %202 = vmatpush.bf16.msra.mxu0 0
    %203 = vmatpush.bf16.msra.mxu0 0
    %204 = vmatpush.bf16.msra.mxu0 0
    %205 = vmatpush.bf16.msra.mxu0 0
    %206 = vmatpush.bf16.msra.mxu0 0
    %207 = vmatpush.bf16.msra.mxu0 0
    %208 = vmatpush.bf16.msra.mxu0 %v199
    %209 = vmatmul.bf16.gmra.mxu0 %v195
    %v210 = vpop.f32.mrf.mxu0
    %v211 = vadd.f32 0.0, %v210
    %v212 = vpop.f32.mrf.mxu0
    %v213 = vadd.f32 0.0, %v212
    %214 = vdwg.mxu0
    %vm215 = vcmask 130048
    %v216 = vsel %vm215, %v211, -inf
    %217 = vmax.xlane.f32.xlu0 %v216
    %v218 = vpop.xlane.xlu0 %217
    %v219 = vsel %vm215, %v213, -inf
    %220 = vmax.xlane.f32.xlu0 %v219
    %v221 = vpop.xlane.xlu0 %220
    %v222 = vsub.f32 %v211, %v218
    %v223 = vsub.f32 %v213, %v221
    %v224 = vmul.f32 %v222, 1.442695
    %v225 = vpow.pop %v224
    %v226 = vmul.f32 %v223, 1.442695
    %v227 = vpow.pop %v226
    %v228 = vsel %vm215, %v225, 0.0
    %229 = vadd.xlane.f32.xlu0 %v228
    %v230 = vpop.xlane.xlu0 %229
    %v231 = vsel %vm215, %v227, 0.0
    %232 = vadd.xlane.f32.xlu0 %v231
    %v233 = vpop.xlane.xlu0 %232
    %v234 = vrcp.pop %v230
    %v235 = vrcp.pop %v233
    %v236 = vmul.f32 %v225, %v234
    %v237 = vmul.f32 %v227, %v235
    %v238 = vpack.c.bf16 %v237, %v236
    %v239 = vld [vmem:[%s7] sm:$0xf]
    %v240 = vld [vmem:[%s7 + $0x4] sm:$0xf]
    %v241 = vld [vmem:[%s7 + $0x8] sm:$0xf]
    %v242 = vld [vmem:[%s7 + $0xc] sm:$0xf]
    %v243 = vld [vmem:[%s7 + $0x10] sm:$0xf]
    %v244 = vld [vmem:[%s7 + $0x14] sm:$0xf]
    %v245 = vld [vmem:[%s7 + $0x18] sm:$0xf]
    %v246 = vld [vmem:[%s7 + $0x1c] sm:$0xf]
    %v247 = vld [vmem:[%s8] sm:$0x1]
    %v249 = vperm.slane %v247, 0
    %v253 = vunpack.c.l.b16 %v140
    %v254 = vunpack.c.l.b16 %v141
    %v255 = vpack.c.b16 %v254, %v253
    %v264 = vunpack.c.l.b16 %v239
    %v265 = vunpack.c.l.b16 %v240
    %v266 = vunpack.c.l.b16 %v241
    %v267 = vunpack.c.l.b16 %v242
    %v268 = vunpack.c.l.b16 %v243
    %v269 = vunpack.c.l.b16 %v244
    %v270 = vunpack.c.l.b16 %v245
    %v271 = vunpack.c.l.b16 %v246
    %v272 = vpack.c.b16 %v265, %v264
    %v273 = vpack.c.b16 %v267, %v266
    %v274 = vpack.c.b16 %v269, %v268
    %v275 = vpack.c.b16 %v271, %v270
    %v281 = vsel %vm110, %v255, 0
    %283 = vmatpush.bf16.msra.mxu0 0
    %284 = vmatpush.bf16.msra.mxu0 0
    %285 = vmatpush.bf16.msra.mxu0 0
    %286 = vmatpush.bf16.msra.mxu0 0
    %287 = vmatpush.bf16.msra.mxu0 %v275
    %288 = vmatpush.bf16.msra.mxu0 %v274
    %289 = vmatpush.bf16.msra.mxu0 %v273
    %290 = vmatpush.bf16.msra.mxu0 %v272
    %291 = vmatmul.bf16.gmra.mxu0 %v281
    %v292 = vpop.f32.mrf.mxu0
    %v293 = vadd.f32 %v249, %v292
    %v294 = vpop.f32.mrf.mxu0
    %v295 = vadd.f32 %v249, %v294
    %296 = vdwg.mxu0
    %v297 = vpack.c.bf16 %v295, %v293
    %v299 = vsel %vm215, %v238, 0
    %301 = vmatpush.bf16.msra.mxu0 0
    %302 = vmatpush.bf16.msra.mxu0 0
    %303 = vmatpush.bf16.msra.mxu0 0
    %304 = vmatpush.bf16.msra.mxu0 0
    %305 = vmatpush.bf16.msra.mxu0 0
    %306 = vmatpush.bf16.msra.mxu0 0
    %307 = vmatpush.bf16.msra.mxu0 0
    %308 = vmatpush.bf16.msra.mxu0 %v297
    %309 = vmatmul.bf16.gmra.mxu0 %v299
    %v310 = vpop.f32.mrf.mxu0
    %v311 = vadd.f32 0.0, %v310
    %v312 = vpop.f32.mrf.mxu0
    %v313 = vadd.f32 0.0, %v312
    %314 = vdwg.mxu0
    %316 = vrot.lane.b32.xlu0 %v192, 120
    %v317 = vpop.permute.xlu0 %316
    %v319 = vsel %vm193, %v317, 0
    %v322 = vsel %vm197, %v137, 0
    %324 = vmatpush.bf16.msra.mxu0 0
    %325 = vmatpush.bf16.msra.mxu0 0
    %326 = vmatpush.bf16.msra.mxu0 0
    %327 = vmatpush.bf16.msra.mxu0 0
    %328 = vmatpush.bf16.msra.mxu0 0
    %329 = vmatpush.bf16.msra.mxu0 0
    %330 = vmatpush.bf16.msra.mxu0 0
    %331 = vmatpush.bf16.msra.mxu0 %v322
    %332 = vmatmul.bf16.gmra.mxu0 %v319
    %v333 = vpop.f32.mrf.mxu0
    %v334 = vadd.f32 0.0, %v333
    %v335 = vpop.f32.mrf.mxu0
    %v336 = vadd.f32 0.0, %v335
    %337 = vdwg.mxu0
    %v338 = vsel %vm215, %v334, -inf
    %339 = vmax.xlane.f32.xlu0 %v338
    %v340 = vpop.xlane.xlu0 %339
    %v341 = vsel %vm215, %v336, -inf
    %342 = vmax.xlane.f32.xlu0 %v341
    %v343 = vpop.xlane.xlu0 %342
    %v344 = vsub.f32 %v334, %v340
    %v345 = vsub.f32 %v336, %v343
    %v346 = vmul.f32 %v344, 1.442695
    %v347 = vpow.pop %v346
    %v348 = vmul.f32 %v345, 1.442695
    %v349 = vpow.pop %v348
    %v350 = vsel %vm215, %v347, 0.0
    %351 = vadd.xlane.f32.xlu0 %v350
    %v352 = vpop.xlane.xlu0 %351
    %v353 = vsel %vm215, %v349, 0.0
    %354 = vadd.xlane.f32.xlu0 %v353
    %v355 = vpop.xlane.xlu0 %354
    %v356 = vrcp.pop %v352
    %v357 = vrcp.pop %v355
    %v358 = vmul.f32 %v347, %v356
    %v359 = vmul.f32 %v349, %v357
    %v360 = vpack.c.bf16 %v359, %v358
    %s361 = scalar_lea.vmem %s7, 32
    %v362 = vld [vmem:[%s361] sm:$0xf]
    %v363 = vld [vmem:[%s361 + $0x4] sm:$0xf]
    %v364 = vld [vmem:[%s361 + $0x8] sm:$0xf]
    %v365 = vld [vmem:[%s361 + $0xc] sm:$0xf]
    %v366 = vld [vmem:[%s361 + $0x10] sm:$0xf]
    %v367 = vld [vmem:[%s361 + $0x14] sm:$0xf]
    %v368 = vld [vmem:[%s361 + $0x18] sm:$0xf]
    %v369 = vld [vmem:[%s361 + $0x1c] sm:$0xf]
    %s370 = scalar_lea.vmem %s8, 1
    %v371 = vld [vmem:[%s370] sm:$0x1]
    %v373 = vperm.slane %v371, 0
    %v383 = vunpack.c.l.b16 %v362
    %v384 = vunpack.c.l.b16 %v363
    %v385 = vunpack.c.l.b16 %v364
    %v386 = vunpack.c.l.b16 %v365
    %v387 = vunpack.c.l.b16 %v366
    %v388 = vunpack.c.l.b16 %v367
    %v389 = vunpack.c.l.b16 %v368
    %v390 = vunpack.c.l.b16 %v369
    %v391 = vpack.c.b16 %v384, %v383
    %v392 = vpack.c.b16 %v386, %v385
    %v393 = vpack.c.b16 %v388, %v387
    %v394 = vpack.c.b16 %v390, %v389
    %399 = vmatpush.bf16.msra.mxu0 0
    %400 = vmatpush.bf16.msra.mxu0 0
    %401 = vmatpush.bf16.msra.mxu0 0
    %402 = vmatpush.bf16.msra.mxu0 0
    %403 = vmatpush.bf16.msra.mxu0 %v394
    %404 = vmatpush.bf16.msra.mxu0 %v393
    %405 = vmatpush.bf16.msra.mxu0 %v392
    %406 = vmatpush.bf16.msra.mxu0 %v391
    %407 = vmatmul.bf16.gmra.mxu0 %v281
    %v408 = vpop.f32.mrf.mxu0
    %v409 = vadd.f32 %v373, %v408
    %v410 = vpop.f32.mrf.mxu0
    %v411 = vadd.f32 %v373, %v410
    %412 = vdwg.mxu0
    %v413 = vpack.c.bf16 %v411, %v409
    %v415 = vsel %vm215, %v360, 0
    %417 = vmatpush.bf16.msra.mxu0 0
    %418 = vmatpush.bf16.msra.mxu0 0
    %419 = vmatpush.bf16.msra.mxu0 0
    %420 = vmatpush.bf16.msra.mxu0 0
    %421 = vmatpush.bf16.msra.mxu0 0
    %422 = vmatpush.bf16.msra.mxu0 0
    %423 = vmatpush.bf16.msra.mxu0 0
    %424 = vmatpush.bf16.msra.mxu0 %v413
    %425 = vmatmul.bf16.gmra.mxu0 %v415
    %v426 = vpop.f32.mrf.mxu0
    %v427 = vadd.f32 0.0, %v426
    %v428 = vpop.f32.mrf.mxu0
    %v429 = vadd.f32 0.0, %v428
    %430 = vdwg.mxu0
    %431 = vrot.lane.b32.xlu0 %v192, 112
    %v432 = vpop.permute.xlu0 %431
    %v434 = vsel %vm193, %v432, 0
    %v437 = vsel %vm197, %v138, 0
    %439 = vmatpush.bf16.msra.mxu0 0
    %440 = vmatpush.bf16.msra.mxu0 0
    %441 = vmatpush.bf16.msra.mxu0 0
    %442 = vmatpush.bf16.msra.mxu0 0
    %443 = vmatpush.bf16.msra.mxu0 0
    %444 = vmatpush.bf16.msra.mxu0 0
    %445 = vmatpush.bf16.msra.mxu0 0
    %446 = vmatpush.bf16.msra.mxu0 %v437
    %447 = vmatmul.bf16.gmra.mxu0 %v434
    %v448 = vpop.f32.mrf.mxu0
    %v449 = vadd.f32 0.0, %v448
    %v450 = vpop.f32.mrf.mxu0
    %v451 = vadd.f32 0.0, %v450
    %452 = vdwg.mxu0
    %v453 = vsel %vm215, %v449, -inf
    %454 = vmax.xlane.f32.xlu0 %v453
    %v455 = vpop.xlane.xlu0 %454
    %v456 = vsel %vm215, %v451, -inf
    %457 = vmax.xlane.f32.xlu0 %v456
    %v458 = vpop.xlane.xlu0 %457
    %v459 = vsub.f32 %v449, %v455
    %v460 = vsub.f32 %v451, %v458
    %v461 = vmul.f32 %v459, 1.442695
    %v462 = vpow.pop %v461
    %v463 = vmul.f32 %v460, 1.442695
    %v464 = vpow.pop %v463
    %v465 = vsel %vm215, %v462, 0.0
    %466 = vadd.xlane.f32.xlu0 %v465
    %v467 = vpop.xlane.xlu0 %466
    %v468 = vsel %vm215, %v464, 0.0
    %469 = vadd.xlane.f32.xlu0 %v468
    %v470 = vpop.xlane.xlu0 %469
    %v471 = vrcp.pop %v467
    %v472 = vrcp.pop %v470
    %v473 = vmul.f32 %v462, %v471
    %v474 = vmul.f32 %v464, %v472
    %v475 = vpack.c.bf16 %v474, %v473
    %s476 = scalar_lea.vmem %s7, 64
    %v477 = vld [vmem:[%s476] sm:$0xf]
    %v478 = vld [vmem:[%s476 + $0x4] sm:$0xf]
    %v479 = vld [vmem:[%s476 + $0x8] sm:$0xf]
    %v480 = vld [vmem:[%s476 + $0xc] sm:$0xf]
    %v481 = vld [vmem:[%s476 + $0x10] sm:$0xf]
    %v482 = vld [vmem:[%s476 + $0x14] sm:$0xf]
    %v483 = vld [vmem:[%s476 + $0x18] sm:$0xf]
    %v484 = vld [vmem:[%s476 + $0x1c] sm:$0xf]
    %s485 = scalar_lea.vmem %s8, 2
    %v486 = vld [vmem:[%s485] sm:$0x1]
    %v488 = vperm.slane %v486, 0
    %v498 = vunpack.c.l.b16 %v477
    %v499 = vunpack.c.l.b16 %v478
    %v500 = vunpack.c.l.b16 %v479
    %v501 = vunpack.c.l.b16 %v480
    %v502 = vunpack.c.l.b16 %v481
    %v503 = vunpack.c.l.b16 %v482
    %v504 = vunpack.c.l.b16 %v483
    %v505 = vunpack.c.l.b16 %v484
    %v506 = vpack.c.b16 %v499, %v498
    %v507 = vpack.c.b16 %v501, %v500
    %v508 = vpack.c.b16 %v503, %v502
    %v509 = vpack.c.b16 %v505, %v504
    %514 = vmatpush.bf16.msra.mxu0 0
    %515 = vmatpush.bf16.msra.mxu0 0
    %516 = vmatpush.bf16.msra.mxu0 0
    %517 = vmatpush.bf16.msra.mxu0 0
    %518 = vmatpush.bf16.msra.mxu0 %v509
    %519 = vmatpush.bf16.msra.mxu0 %v508
    %520 = vmatpush.bf16.msra.mxu0 %v507
    %521 = vmatpush.bf16.msra.mxu0 %v506
    %522 = vmatmul.bf16.gmra.mxu0 %v281
    %v523 = vpop.f32.mrf.mxu0
    %v524 = vadd.f32 %v488, %v523
    %v525 = vpop.f32.mrf.mxu0
    %v526 = vadd.f32 %v488, %v525
    %527 = vdwg.mxu0
    %v528 = vpack.c.bf16 %v526, %v524
    %v530 = vsel %vm215, %v475, 0
    %532 = vmatpush.bf16.msra.mxu0 0
    %533 = vmatpush.bf16.msra.mxu0 0
    %534 = vmatpush.bf16.msra.mxu0 0
    %535 = vmatpush.bf16.msra.mxu0 0
    %536 = vmatpush.bf16.msra.mxu0 0
    %537 = vmatpush.bf16.msra.mxu0 0
    %538 = vmatpush.bf16.msra.mxu0 0
    %539 = vmatpush.bf16.msra.mxu0 %v528
    %540 = vmatmul.bf16.gmra.mxu0 %v530
    %v541 = vpop.f32.mrf.mxu0
    %v542 = vadd.f32 0.0, %v541
    %v543 = vpop.f32.mrf.mxu0
    %v544 = vadd.f32 0.0, %v543
    %545 = vdwg.mxu0
    %546 = vrot.lane.b32.xlu0 %v192, 104
    %v547 = vpop.permute.xlu0 %546
    %v549 = vsel %vm193, %v547, 0
    %v552 = vsel %vm197, %v139, 0
    %554 = vmatpush.bf16.msra.mxu0 0
    %555 = vmatpush.bf16.msra.mxu0 0
    %556 = vmatpush.bf16.msra.mxu0 0
    %557 = vmatpush.bf16.msra.mxu0 0
    %558 = vmatpush.bf16.msra.mxu0 0
    %559 = vmatpush.bf16.msra.mxu0 0
    %560 = vmatpush.bf16.msra.mxu0 0
    %561 = vmatpush.bf16.msra.mxu0 %v552
    %562 = vmatmul.bf16.gmra.mxu0 %v549
    %v563 = vpop.f32.mrf.mxu0
    %v564 = vadd.f32 0.0, %v563
    %v565 = vpop.f32.mrf.mxu0
    %v566 = vadd.f32 0.0, %v565
    %567 = vdwg.mxu0
    %v568 = vsel %vm215, %v564, -inf
    %569 = vmax.xlane.f32.xlu0 %v568
    %v570 = vpop.xlane.xlu0 %569
    %v571 = vsel %vm215, %v566, -inf
    %572 = vmax.xlane.f32.xlu0 %v571
    %v573 = vpop.xlane.xlu0 %572
    %v574 = vsub.f32 %v564, %v570
    %v575 = vsub.f32 %v566, %v573
    %v576 = vmul.f32 %v574, 1.442695
    %v577 = vpow.pop %v576
    %v578 = vmul.f32 %v575, 1.442695
    %v579 = vpow.pop %v578
    %v580 = vsel %vm215, %v577, 0.0
    %581 = vadd.xlane.f32.xlu0 %v580
    %v582 = vpop.xlane.xlu0 %581
    %v583 = vsel %vm215, %v579, 0.0
    %584 = vadd.xlane.f32.xlu0 %v583
    %v585 = vpop.xlane.xlu0 %584
    %v586 = vrcp.pop %v582
    %v587 = vrcp.pop %v585
    %v588 = vmul.f32 %v577, %v586
    %v589 = vmul.f32 %v579, %v587
    %v590 = vpack.c.bf16 %v589, %v588
    %s591 = scalar_lea.vmem %s7, 96
    %v592 = vld [vmem:[%s591] sm:$0xf]
    %v593 = vld [vmem:[%s591 + $0x4] sm:$0xf]
    %v594 = vld [vmem:[%s591 + $0x8] sm:$0xf]
    %v595 = vld [vmem:[%s591 + $0xc] sm:$0xf]
    %v596 = vld [vmem:[%s591 + $0x10] sm:$0xf]
    %v597 = vld [vmem:[%s591 + $0x14] sm:$0xf]
    %v598 = vld [vmem:[%s591 + $0x18] sm:$0xf]
    %v599 = vld [vmem:[%s591 + $0x1c] sm:$0xf]
    %s600 = scalar_lea.vmem %s8, 3
    %v601 = vld [vmem:[%s600] sm:$0x1]
    %v603 = vperm.slane %v601, 0
    %v613 = vunpack.c.l.b16 %v592
    %v614 = vunpack.c.l.b16 %v593
    %v615 = vunpack.c.l.b16 %v594
    %v616 = vunpack.c.l.b16 %v595
    %v617 = vunpack.c.l.b16 %v596
    %v618 = vunpack.c.l.b16 %v597
    %v619 = vunpack.c.l.b16 %v598
    %v620 = vunpack.c.l.b16 %v599
    %v621 = vpack.c.b16 %v614, %v613
    %v622 = vpack.c.b16 %v616, %v615
    %v623 = vpack.c.b16 %v618, %v617
    %v624 = vpack.c.b16 %v620, %v619
    %629 = vmatpush.bf16.msra.mxu0 0
    %630 = vmatpush.bf16.msra.mxu0 0
    %631 = vmatpush.bf16.msra.mxu0 0
    %632 = vmatpush.bf16.msra.mxu0 0
    %633 = vmatpush.bf16.msra.mxu0 %v624
    %634 = vmatpush.bf16.msra.mxu0 %v623
    %635 = vmatpush.bf16.msra.mxu0 %v622
    %636 = vmatpush.bf16.msra.mxu0 %v621
    %637 = vmatmul.bf16.gmra.mxu0 %v281
    %v638 = vpop.f32.mrf.mxu0
    %v639 = vadd.f32 %v603, %v638
    %v640 = vpop.f32.mrf.mxu0
    %v641 = vadd.f32 %v603, %v640
    %642 = vdwg.mxu0
    %v643 = vpack.c.bf16 %v641, %v639
    %v645 = vsel %vm215, %v590, 0
    %647 = vmatpush.bf16.msra.mxu0 0
    %648 = vmatpush.bf16.msra.mxu0 0
    %649 = vmatpush.bf16.msra.mxu0 0
    %650 = vmatpush.bf16.msra.mxu0 0
    %651 = vmatpush.bf16.msra.mxu0 0
    %652 = vmatpush.bf16.msra.mxu0 0
    %653 = vmatpush.bf16.msra.mxu0 0
    %654 = vmatpush.bf16.msra.mxu0 %v643
    %655 = vmatmul.bf16.gmra.mxu0 %v645
    %v656 = vpop.f32.mrf.mxu0
    %v657 = vadd.f32 0.0, %v656
    %v658 = vpop.f32.mrf.mxu0
    %v659 = vadd.f32 0.0, %v658
    %660 = vdwg.mxu0
    %663 = vrot.lane.b32.xlu0 %v427, 8
    %v664 = vpop.permute.xlu0 %663
    %665 = vrot.lane.b32.xlu0 %v429, 8
    %v666 = vpop.permute.xlu0 %665
    %671 = vrot.lane.b32.xlu0 %v542, 16
    %v672 = vpop.permute.xlu0 %671
    %673 = vrot.lane.b32.xlu0 %v544, 16
    %v674 = vpop.permute.xlu0 %673
    %679 = vrot.lane.b32.xlu0 %v657, 24
    %v680 = vpop.permute.xlu0 %679
    %681 = vrot.lane.b32.xlu0 %v659, 24
    %v682 = vpop.permute.xlu0 %681
    %v685 = vsel %vm193, %v311, %v664
    %v686 = vsel %vm193, %v313, %v666
    %v687 = vsel %vm215, %v685, %v672
    %v688 = vsel %vm215, %v686, %v674
    %vm689 = vcmask 195584
    %v690 = vsel %vm689, %v687, %v680
    %v691 = vsel %vm689, %v688, %v682
    %v692 = vpack.c.bf16 %v691, %v690
    %v694 = vperm.slane %v153, 0
    %v700 = vunpack.c.l.b16 %v149
    %v701 = vunpack.c.l.b16 %v150
    %v702 = vunpack.c.l.b16 %v151
    %v703 = vunpack.c.l.b16 %v152
    %v704 = vpack.c.b16 %v701, %v700
    %v705 = vpack.c.b16 %v703, %v702
    %v709 = vsel %vm174, %v692, 0
    %711 = vmatpush.bf16.msra.mxu0 0
    %712 = vmatpush.bf16.msra.mxu0 0
    %713 = vmatpush.bf16.msra.mxu0 0
    %714 = vmatpush.bf16.msra.mxu0 0
    %715 = vmatpush.bf16.msra.mxu0 0
    %716 = vmatpush.bf16.msra.mxu0 0
    %717 = vmatpush.bf16.msra.mxu0 %v705
    %718 = vmatpush.bf16.msra.mxu0 %v704
    %719 = vmatmul.bf16.gmra.mxu0 %v709
    %v720 = vpop.f32.mrf.mxu0
    %v721 = vadd.f32 %v694, %v720
    %v722 = vpop.f32.mrf.mxu0
    %v723 = vadd.f32 %v694, %v722
    %724 = vdwg.mxu0
    %725 = vst.msk [vmem:[#allocation2] sm:$0xff] %vm110, %v721
    %726 = vst.msk [vmem:[#allocation2 + $0x8] sm:$0xff] %vm110, %v723
    // Predicated region
    $region46: #{tpu_custom_call.1} parent=1 // pred_check
      _
    $region47: #{tpu_custom_call.1} parent=1 // pred_check_branch
      %728 = sbr.rel (0) target = $region49
    $region48: #{tpu_custom_call.1} parent=1 // pred_region
      %730 = vsyncadd [#allocation3], 0
      %s731 = sshll.u32 [#allocation2], 4
      %s732 = int_to_ptr.vmem [resolvable:$true] %s731
      %s733 = sshll.u32 %s11, 4
      %s734 = int_to_ptr.hbm [resolvable:$true] %s733
      %739 = dma.vmem_to_hbm [thread:$0]  %s732, 256, %s734, [#allocation3], 128, 128, 8
    $region49: #{tpu_custom_call.1} parent=1 // pred_fallthru
      _
    // Predicated region
    $region50: #{tpu_custom_call.1} parent=1 // pred_check
      _
    $region51: #{tpu_custom_call.1} parent=1 // pred_check_branch
      %741 = sbr.rel (0) target = $region53
    $region52: #{tpu_custom_call.1} parent=1 // pred_region
      %743 = dma.done [#allocation3], 256
    $region53: #{tpu_custom_call.1} parent=1 // pred_fallthru
      _
    %744 = vsyncpa [#allocation3], 1

</llo_original>
